<compile_context>
chip_gen: v7x
topology: tpu7x:2x2x1
jax: 0.10.0
libtpu: 0.0.40
codegen_flags: <defaults>
</compile_context>

<pallas_src>
import jax
import jax.numpy as jnp
from jax.experimental import pallas as pl
from jax.experimental.pallas import tpu as pltpu

_LANE = 128       # vreg lane width
_SUBLANE = 8      # f32 sublane count
_NEG_INF = -1e30  # bias for padded hidden lanes -> exp underflows to exactly 0


def _round_up(x, m):
    return ((x + m - 1) // m) * m


def _nn_classifier_kernel(x_ref, w1_ref, b1_ref, w2_ref, b2_ref, out_ref):
    # x:  (TB, D_in) f32     w1: (D_in, Hp) bf16   b1: (1, Hp) f32
    # w2: (Hp, Dp)  bf16     b2: (1, Dp)  f32      out: (TB, Dp) f32
    x = x_ref[...]

    # hidden Linear: bf16 operands on the MXU, f32 accumulation, f32 bias add.
    h = jnp.dot(x.astype(jnp.bfloat16), w1_ref[...],
                preferred_element_type=jnp.float32) + b1_ref[...]

    # numerically-stable softmax over the (lane-dense) padded hidden dim.
    # Padded lanes carry a -1e30 bias -> exp underflows to 0, denom unaffected.
    m = jnp.max(h, axis=-1, keepdims=True)
    e = jnp.exp(h - m)
    denom = jnp.sum(e, axis=-1, keepdims=True)
    p = e * pl.reciprocal(denom, approx=True)   # EUP vrcp: effectively free

    # classifier Linear + ReLU. Padded output lanes are exactly 0 (zero W2/b2 pad).
    logits = jnp.dot(p.astype(jnp.bfloat16), w2_ref[...],
                     preferred_element_type=jnp.float32) + b2_ref[...]
    out_ref[...] = jnp.maximum(logits, 0.0).astype(out_ref.dtype)


def nn_classifier_forward(x, w1, b1, w2, b2):
    """x: (B, D_in), w1: (D_in, H), b1: (H,), w2: (H, D_out), b2: (D_out,)."""
    B, D_in = x.shape
    H = w1.shape[1]
    D_out = w2.shape[1]

    # Lane-dense padding for hidden / output dims.
    Hp = _round_up(H, _LANE)
    Dp = _round_up(D_out, _LANE)

    # Batch tile: large lane/sublane-aligned tile for real B, full batch when tiny.
    TB = _LANE if B >= _LANE else _round_up(B, _SUBLANE)
    Bp = _round_up(B, TB)

    # Pad inputs / parameters once in the wrapper (weights also cast to bf16 once).
    x_p = jnp.zeros((Bp, D_in), jnp.float32).at[:B, :].set(x.astype(jnp.float32))
    w1_p = jnp.zeros((D_in, Hp), jnp.bfloat16).at[:, :H].set(w1.astype(jnp.bfloat16))
    b1_p = jnp.full((1, Hp), _NEG_INF, jnp.float32).at[0, :H].set(b1.astype(jnp.float32))
    w2_p = jnp.zeros((Hp, Dp), jnp.bfloat16).at[:H, :D_out].set(w2.astype(jnp.bfloat16))
    b2_p = jnp.zeros((1, Dp), jnp.float32).at[0, :D_out].set(b2.astype(jnp.float32))

    grid = (Bp // TB,)

    # Advisory cost estimate (real scaled FLOPs / bytes for XLA scheduling).
    flops = 2 * Bp * D_in * Hp + 2 * Bp * Hp * Dp
    bytes_accessed = (x_p.size * 4 + w1_p.size * 2 + b1_p.size * 4
                      + w2_p.size * 2 + b2_p.size * 4 + Bp * Dp * 4)
    cost = pl.CostEstimate(flops=flops, transcendentals=Bp * Hp,
                           bytes_accessed=bytes_accessed)

    # VMEM budget: resident weights + double-buffered x/out tiles, with headroom,
    # clamped to 32 MiB so it is safe on v7x's 64 MiB physical VMEM.
    vmem_bytes = (w1_p.size * 2 + w2_p.size * 2 + b1_p.size * 4 + b2_p.size * 4
                  + 2 * TB * D_in * 4 + 2 * TB * Dp * 4)
    vmem_limit = int(min(max(4 * vmem_bytes, 4 << 20), 32 << 20))

    out_p = pl.pallas_call(
        _nn_classifier_kernel,
        out_shape=jax.ShapeDtypeStruct((Bp, Dp), jnp.float32),
        grid=grid,
        in_specs=[
            pl.BlockSpec((TB, D_in), lambda i: (i, 0)),   # x: tiled over batch
            pl.BlockSpec((D_in, Hp), lambda i: (0, 0)),   # w1: resident in VMEM
            pl.BlockSpec((1, Hp),    lambda i: (0, 0)),   # b1: resident
            pl.BlockSpec((Hp, Dp),   lambda i: (0, 0)),   # w2: resident
            pl.BlockSpec((1, Dp),    lambda i: (0, 0)),   # b2: resident
        ],
        out_specs=pl.BlockSpec((TB, Dp), lambda i: (i, 0)),
        compiler_params=pltpu.CompilerParams(
            dimension_semantics=("parallel",),            # shard batch across TCs (v7x)
            vmem_limit_bytes=vmem_limit,
        ),
        cost_estimate=cost,
    )(x_p, w1_p, b1_p, w2_p, b2_p)

    return out_p[:B, :D_out]


if __name__ == "__main__":
    # Small shapes consistent with the module's forward.
    batch = 8
    input_size = 32
    hidden_size = 32
    output_size = 16

    key = jax.random.PRNGKey(0)
    k_x, k_w1, k_b1, k_w2, k_b2 = jax.random.split(key, 5)

    x = jax.random.normal(k_x, (batch, input_size), dtype=jnp.float32)

    # PyTorch Linear stores weight as (out, in); keep (in, out) so kernel does x @ W.
    bound1 = 1.0 / (input_size ** 0.5)
    w1 = jax.random.uniform(k_w1, (input_size, hidden_size), jnp.float32, -bound1, bound1)
    b1 = jax.random.uniform(k_b1, (hidden_size,), jnp.float32, -bound1, bound1)

    bound2 = 1.0 / (hidden_size ** 0.5)
    w2 = jax.random.uniform(k_w2, (hidden_size, output_size), jnp.float32, -bound2, bound2)
    b2 = jax.random.uniform(k_b2, (output_size,), jnp.float32, -bound2, bound2)

    out = nn_classifier_forward(x, w1, b1, w2, b2)
    out = jax.block_until_ready(out)

    # f32 reference; tolerance loosened for bf16 MXU operands + approx reciprocal.
    h_ref = x @ w1 + b1
    p_ref = jax.nn.softmax(h_ref, axis=-1)
    ref = jnp.maximum(p_ref @ w2 + b2, 0.0)
    assert out.shape == ref.shape, f"shape mismatch {out.shape} vs {ref.shape}"
    assert jnp.allclose(out, ref, atol=2e-2, rtol=2e-2), "mismatch vs reference"

    print("KERNEL_OK")
</pallas_src>

<mosaic_0001>
module attributes {stable_mosaic.version = 11 : i64} {
  func.func @_nn_classifier_kernel(%arg0: i32, %arg1: memref<8x32xf32, #tpu.memory_space<vmem>>, %arg2: memref<32x128xbf16, #tpu.memory_space<vmem>>, %arg3: memref<1x128xf32, #tpu.memory_space<vmem>>, %arg4: memref<128x128xbf16, #tpu.memory_space<vmem>>, %arg5: memref<1x128xf32, #tpu.memory_space<vmem>>, %arg6: memref<8x128xf32, #tpu.memory_space<vmem>>) attributes {dimension_semantics = [#tpu.dimension_semantics<parallel>], iteration_bounds = array<i64: 1>, scalar_prefetch = 0 : i64, scratch_operands = 0 : i64, tpu.core_type = #tpu.core_type<tc>, window_params = [{transform_indices = @transform_0, window_bounds = array<i64: 8, 32>}, {pipeline_mode = #tpu.pipeline_mode<synchronous>, transform_indices = @transform_1, window_bounds = array<i64: 32, 128>}, {pipeline_mode = #tpu.pipeline_mode<synchronous>, transform_indices = @transform_2, window_bounds = array<i64: 1, 128>}, {pipeline_mode = #tpu.pipeline_mode<synchronous>, transform_indices = @transform_3, window_bounds = array<i64: 128, 128>}, {pipeline_mode = #tpu.pipeline_mode<synchronous>, transform_indices = @transform_4, window_bounds = array<i64: 1, 128>}, {transform_indices = @transform_5, window_bounds = array<i64: 8, 128>}]} {
    %c0 = arith.constant 0 : index
    %c0_0 = arith.constant 0 : index
    %0 = vector.load %arg1[%c0, %c0_0] : memref<8x32xf32, #tpu.memory_space<vmem>>, vector<8x32xf32>
    %1 = arith.truncf %0 : vector<8x32xf32> to vector<8x32xbf16>
    %c0_1 = arith.constant 0 : index
    %c0_2 = arith.constant 0 : index
    %2 = vector.load %arg2[%c0_1, %c0_2] : memref<32x128xbf16, #tpu.memory_space<vmem>>, vector<32x128xbf16>
    %cst = arith.constant dense<0.000000e+00> : vector<8x128xf32>
    %3 = tpu.matmul %1, %2, %cst {dimension_numbers = #tpu.dot_dimension_numbers<[1], [0], [0], [1], [0, 0, 1, 1], [], []>} : vector<8x32xbf16>, vector<32x128xbf16>, vector<8x128xf32> -> vector<8x128xf32>
    %c0_3 = arith.constant 0 : index
    %c0_4 = arith.constant 0 : index
    %4 = vector.load %arg3[%c0_3, %c0_4] : memref<1x128xf32, #tpu.memory_space<vmem>>, vector<1x128xf32>
    %5 = vector.broadcast %4 : vector<1x128xf32> to vector<8x128xf32>
    %6 = arith.addf %3, %5 : vector<8x128xf32>
    %cst_5 = arith.constant dense<0xFF800000> : vector<8xf32>
    %7 = vector.multi_reduction <maximumf>, %6, %cst_5 [1] : vector<8x128xf32> to vector<8xf32>
    %8 = vector.shape_cast %7 : vector<8xf32> to vector<8x1xf32>
    %9 = vector.broadcast %8 : vector<8x1xf32> to vector<8x128xf32>
    %10 = arith.subf %6, %9 : vector<8x128xf32>
    %11 = math.exp %10 : vector<8x128xf32>
    %cst_6 = arith.constant dense<0.000000e+00> : vector<8xf32>
    %12 = vector.multi_reduction <add>, %11, %cst_6 [1] : vector<8x128xf32> to vector<8xf32>
    %13 = vector.shape_cast %12 : vector<8xf32> to vector<8x1xf32>
    %14 = tpu.reciprocal %13 {approx = true} : vector<8x1xf32> -> vector<8x1xf32>
    %15 = vector.broadcast %14 : vector<8x1xf32> to vector<8x128xf32>
    %16 = arith.mulf %11, %15 : vector<8x128xf32>
    %17 = arith.truncf %16 : vector<8x128xf32> to vector<8x128xbf16>
    %c0_7 = arith.constant 0 : index
    %c0_8 = arith.constant 0 : index
    %18 = vector.load %arg4[%c0_7, %c0_8] : memref<128x128xbf16, #tpu.memory_space<vmem>>, vector<128x128xbf16>
    %cst_9 = arith.constant dense<0.000000e+00> : vector<8x128xf32>
    %19 = tpu.matmul %17, %18, %cst_9 {dimension_numbers = #tpu.dot_dimension_numbers<[1], [0], [0], [1], [0, 0, 1, 1], [], []>} : vector<8x128xbf16>, vector<128x128xbf16>, vector<8x128xf32> -> vector<8x128xf32>
    %c0_10 = arith.constant 0 : index
    %c0_11 = arith.constant 0 : index
    %20 = vector.load %arg5[%c0_10, %c0_11] : memref<1x128xf32, #tpu.memory_space<vmem>>, vector<1x128xf32>
    %21 = vector.broadcast %20 : vector<1x128xf32> to vector<8x128xf32>
    %22 = arith.addf %19, %21 : vector<8x128xf32>
    %cst_12 = arith.constant 0.000000e+00 : f32
    %23 = vector.broadcast %cst_12 : f32 to vector<8x128xf32>
    %24 = arith.maximumf %22, %23 : vector<8x128xf32>
    %c0_13 = arith.constant 0 : index
    %c0_14 = arith.constant 0 : index
    %25 = vector.load %arg6[%c0_13, %c0_14] : memref<8x128xf32, #tpu.memory_space<vmem>>, vector<8x128xf32>
    tpu.vector_store %arg6[%c0_13, %c0_14], %24 {strides = array<i32>} : memref<8x128xf32, #tpu.memory_space<vmem>>, vector<8x128xf32>,
    return
  }
  func.func @transform_0(%arg0: i32) -> (i32, i32) {
    %c0_i32 = arith.constant 0 : i32
    %c0_i32_0 = arith.constant 0 : i32
    return %arg0, %c0_i32 : i32, i32
  }
  func.func @transform_1(%arg0: i32) -> (i32, i32) {
    %c0_i32 = arith.constant 0 : i32
    %c0_i32_0 = arith.constant 0 : i32
    %c0_i32_1 = arith.constant 0 : i32
    return %c0_i32, %c0_i32_0 : i32, i32
  }
  func.func @transform_2(%arg0: i32) -> (i32, i32) {
    %c0_i32 = arith.constant 0 : i32
    %c0_i32_0 = arith.constant 0 : i32
    %c0_i32_1 = arith.constant 0 : i32
    return %c0_i32, %c0_i32_0 : i32, i32
  }
  func.func @transform_3(%arg0: i32) -> (i32, i32) {
    %c0_i32 = arith.constant 0 : i32
    %c0_i32_0 = arith.constant 0 : i32
    %c0_i32_1 = arith.constant 0 : i32
    return %c0_i32, %c0_i32_0 : i32, i32
  }
  func.func @transform_4(%arg0: i32) -> (i32, i32) {
    %c0_i32 = arith.constant 0 : i32
    %c0_i32_0 = arith.constant 0 : i32
    %c0_i32_1 = arith.constant 0 : i32
    return %c0_i32, %c0_i32_0 : i32, i32
  }
  func.func @transform_5(%arg0: i32) -> (i32, i32) {
    %c0_i32 = arith.constant 0 : i32
    %c0_i32_0 = arith.constant 0 : i32
    return %arg0, %c0_i32 : i32, i32
  }
}

</mosaic_0001>

<llo_original>
// kernel: tpu_custom_call.1
$region0: #{tpu_custom_call.1}
  #allocation0 [shape = 'u32[]', space=smem, size = 0x4, offset = 0x4, fixed_abs, tag = 'smem constant byte address 0x4 - core index']
  #allocation1 [shape = 'u32[144,128]{1,0:T(1,128)}', space=vmem, size = 0x12000, scoped, tag = 'internal scratch']
  %s0 = inlined_call_operand.hbm [shape: f32[8,32], index: 0, kind: input, shape index: {}]
  %s1 = inlined_call_operand.hbm [shape: bf16[32,128], index: 1, kind: input, shape index: {}]
  %s2 = inlined_call_operand.vmem [shape: f32[1,128], index: 2, kind: input, shape index: {}]
  %s3 = inlined_call_operand.hbm [shape: bf16[128,128], index: 3, kind: input, shape index: {}]
  %s4 = inlined_call_operand.vmem [shape: f32[1,128], index: 4, kind: input, shape index: {}]
  %s5 = inlined_call_operand.hbm [shape: f32[8,128], index: 5, kind: output, shape index: {}]
  %s6 = sld [smem:[#allocation0]]
  $region42: #{tpu_custom_call.1} parent=0
    _
  %s8 = ssub.s32 1, %s6
  %s9 = scalar_select 0, %s8, %s6
  $region1: #{tpu_custom_call.1} parent=0
    #allocation2 [shape = 'u8[4096]{0}', space=vmem, size = 0x1000, scoped, tag = 'input window, operand 0, single buffered']
    #allocation3 [shape = 's32[1]{0}', space=sflag, size = 0x4, scoped, tag = 'scoped memory for tpu_custom_call.1']
    #allocation4 [shape = 's32[1]{0}', space=sflag, size = 0x4, scoped, tag = 'scoped memory for tpu_custom_call.1']
    #allocation5 [shape = 'u8[8192]{0}', space=vmem, size = 0x2000, scoped, tag = 'input window, operand 1, single buffered']
    #allocation6 [shape = 's32[1]{0}', space=sflag, size = 0x4, scoped, tag = 'scoped memory for tpu_custom_call.1']
    #allocation7 [shape = 'u8[32768]{0}', space=vmem, size = 0x8000, scoped, tag = 'input window, operand 3, single buffered']
    #allocation8 [shape = 'u8[4096]{0}', space=vmem, size = 0x1000, scoped, tag = 'output window, operand 0, single buffered']
    %10 = vsyncpa [#allocation3], 0
    %11 = vsyncpa [#allocation6], 0
    %12 = vsyncpa [#allocation4], 0
    // Predicated region
    $region2: #{tpu_custom_call.1} parent=1 // pred_check
      _
    $region3: #{tpu_custom_call.1} parent=1 // pred_check_branch
      %14 = sbr.rel (0) target = $region5
    $region4: #{tpu_custom_call.1} parent=1 // pred_region
      %s16 = ssub.s32 128, 128
      %17 = vsyncadd [#allocation3], %s16
      %s19 = sshll.u32 [#allocation2], 4
      %s20 = int_to_ptr.vmem [resolvable:$true] %s19
      %22 = dma.hbm_to_vmem [thread:$0]  %s0, 128, %s20, [#allocation3]
    $region5: #{tpu_custom_call.1} parent=1 // pred_fallthru
      _
    // Predicated region
    $region6: #{tpu_custom_call.1} parent=1 // pred_check
      _
    $region7: #{tpu_custom_call.1} parent=1 // pred_check_branch
      %24 = sbr.rel (0) target = $region9
    $region8: #{tpu_custom_call.1} parent=1 // pred_region
      %s26 = ssub.s32 256, 256
      %27 = vsyncadd [#allocation6], %s26
      %s28 = sshll.u32 [#allocation5], 4
      %s29 = int_to_ptr.vmem [resolvable:$true] %s28
      %34 = dma.hbm_to_vmem [thread:$0]  %s1, 256, %s29, [#allocation6], 64, 64, 4
    $region9: #{tpu_custom_call.1} parent=1 // pred_fallthru
      _
    // Predicated region
    $region10: #{tpu_custom_call.1} parent=1 // pred_check
      _
    $region11: #{tpu_custom_call.1} parent=1 // pred_check_branch
      %36 = sbr.rel (0) target = $region13
    $region12: #{tpu_custom_call.1} parent=1 // pred_region
      _
    $region13: #{tpu_custom_call.1} parent=1 // pred_fallthru
      _
    // Predicated region
    $region14: #{tpu_custom_call.1} parent=1 // pred_check
      _
    $region15: #{tpu_custom_call.1} parent=1 // pred_check_branch
      %38 = sbr.rel (0) target = $region17
    $region16: #{tpu_custom_call.1} parent=1 // pred_region
      %s40 = ssub.s32 1024, 1024
      %41 = vsyncadd [#allocation6], %s40
      %s42 = sshll.u32 [#allocation7], 4
      %s43 = int_to_ptr.vmem [resolvable:$true] %s42
      %48 = dma.hbm_to_vmem [thread:$0]  %s3, 1024, %s43, [#allocation6], 64, 64, 4
    $region17: #{tpu_custom_call.1} parent=1 // pred_fallthru
      _
    // Predicated region
    $region18: #{tpu_custom_call.1} parent=1 // pred_check
      _
    $region19: #{tpu_custom_call.1} parent=1 // pred_check_branch
      %50 = sbr.rel (0) target = $region21
    $region20: #{tpu_custom_call.1} parent=1 // pred_region
      _
    $region21: #{tpu_custom_call.1} parent=1 // pred_fallthru
      _
    // Predicated region
    $region22: #{tpu_custom_call.1} parent=1 // pred_check
      _
    $region23: #{tpu_custom_call.1} parent=1 // pred_check_branch
      %52 = sbr.rel (0) target = $region25
    $region24: #{tpu_custom_call.1} parent=1 // pred_region
      %53 = dma.done [#allocation3], 128
    $region25: #{tpu_custom_call.1} parent=1 // pred_fallthru
      _
    // Predicated region
    $region26: #{tpu_custom_call.1} parent=1 // pred_check
      _
    $region27: #{tpu_custom_call.1} parent=1 // pred_check_branch
      %55 = sbr.rel (0) target = $region29
    $region28: #{tpu_custom_call.1} parent=1 // pred_region
      %56 = dma.done [#allocation6], 256
    $region29: #{tpu_custom_call.1} parent=1 // pred_fallthru
      _
    // Predicated region
    $region30: #{tpu_custom_call.1} parent=1 // pred_check
      _
    $region31: #{tpu_custom_call.1} parent=1 // pred_check_branch
      %58 = sbr.rel (0) target = $region33
    $region32: #{tpu_custom_call.1} parent=1 // pred_region
      %59 = dma.done [#allocation6], 1024
    $region33: #{tpu_custom_call.1} parent=1 // pred_fallthru
      _
    %v61 = vld [vmem:[#allocation2] sm:$0xff]
    %v62 = vpack.c.bf16 %v61, %v61
    %v63 = vld [vmem:[#allocation5] sm:$0xf]
    %v64 = vld [vmem:[#allocation5 + $0x4] sm:$0xf]
    %v65 = vld [vmem:[#allocation5 + $0x8] sm:$0xf]
    %v66 = vld [vmem:[#allocation5 + $0xc] sm:$0xf]
    %v67 = vld [vmem:[%s2] sm:$0x1]
    %v69 = vlaneseq
    %v70 = vshrl.u32 %v69, 7
    %v71 = vsub.s32 0, %v70
    %v72 = vrot.slane %v67, %v71
    %v78 = vunpack.c.l.b16 %v63
    %v79 = vunpack.c.l.b16 %v64
    %v80 = vunpack.c.l.b16 %v65
    %v81 = vunpack.c.l.b16 %v66
    %v82 = vpack.c.b16 %v79, %v78
    %v83 = vpack.c.b16 %v81, %v80
    %vm86 = vcmask 261120
    %v88 = vsel %vm86, %v62, 0
    %90 = vmatprep.subr.bf16.mxu0 0
    %91 = vmatpush1.bf16.msra.mxu0 %v82
    %92 = vmatprep.subr.bf16.mxu0 0
    %93 = vmatpush1.bf16.msra.mxu0 %v83
    %94 = vmatprep.subr.bf16.mxu0 0
    %95 = vmatpush1.bf16.msra.mxu0 0
    %96 = vmatprep.subr.bf16.mxu0 0
    %97 = vmatpush1.bf16.msra.mxu0 0
    %98 = vmatprep.subr.bf16.mxu0 0
    %99 = vmatpush1.bf16.msra.mxu0 0
    %100 = vmatprep.subr.bf16.mxu0 0
    %101 = vmatpush1.bf16.msra.mxu0 0
    %102 = vmatprep.subr.bf16.mxu0 0
    %103 = vmatpush1.bf16.msra.mxu0 0
    %104 = vmatprep.subr.bf16.mxu0 0
    %105 = vmatpush1.bf16.msra.mxu0 0
    %106 = vmatprep.subr.bf16.mxu0 0
    %107 = vmatpush1.bf16.msra.mxu0 0
    %108 = vmatprep.subr.bf16.mxu0 0
    %109 = vmatpush1.bf16.msra.mxu0 0
    %110 = vmatprep.subr.bf16.mxu0 0
    %111 = vmatpush1.bf16.msra.mxu0 0
    %112 = vmatprep.subr.bf16.mxu0 0
    %113 = vmatpush1.bf16.msra.mxu0 0
    %114 = vmatprep.subr.bf16.mxu0 0
    %115 = vmatpush1.bf16.msra.mxu0 0
    %116 = vmatprep.subr.bf16.mxu0 0
    %117 = vmatpush1.bf16.msra.mxu0 0
    %118 = vmatprep.subr.bf16.mxu0 0
    %119 = vmatpush1.bf16.msra.mxu0 0
    %120 = vmatprep.subr.bf16.mxu0 0
    %121 = vmatpush1.bf16.msra.mxu0 0
    %122 = vmatprep.mubr.bf16.mxu0 0
    %123 = vmatmul.mubr.bf16.gmra.mrb[0].mxu0 %v88
    %v124 = vpop.f32.mrb[0].mxu0
    %v125 = vadd.f32 %v72, %v124
    %v126 = vpop.f32.mrb[0].mxu0
    %v127 = vpop.f32.mrb[0].mxu0
    %v128 = vpop.f32.mrb[0].mxu0
    %129 = vdwg.mxu0
    %130 = vmax.xlane.f32.xlu0 %v125
    %v131 = vpop.xlane.xlu0 %130
    %v132 = vsub.f32 %v125, %v131
    %v133 = vmul.f32 %v132, 1.442695
    %v134 = vpow.pop %v133
    %135 = vadd.xlane.f32.xlu0 %v134
    %v136 = vpop.xlane.xlu0 %135
    %v137 = vrcp.pop %v136
    %v138 = vmul.f32 %v134, %v137
    %v139 = vpack.c.bf16 %v138, %v138
    %v140 = vld [vmem:[#allocation7] sm:$0xf]
    %v141 = vld [vmem:[#allocation7 + $0x4] sm:$0xf]
    %v142 = vld [vmem:[#allocation7 + $0x8] sm:$0xf]
    %v143 = vld [vmem:[#allocation7 + $0xc] sm:$0xf]
    %v144 = vld [vmem:[#allocation7 + $0x10] sm:$0xf]
    %v145 = vld [vmem:[#allocation7 + $0x14] sm:$0xf]
    %v146 = vld [vmem:[#allocation7 + $0x18] sm:$0xf]
    %v147 = vld [vmem:[#allocation7 + $0x1c] sm:$0xf]
    %v148 = vld [vmem:[#allocation7 + $0x20] sm:$0xf]
    %v149 = vld [vmem:[#allocation7 + $0x24] sm:$0xf]
    %v150 = vld [vmem:[#allocation7 + $0x28] sm:$0xf]
    %v151 = vld [vmem:[#allocation7 + $0x2c] sm:$0xf]
    %v152 = vld [vmem:[#allocation7 + $0x30] sm:$0xf]
    %v153 = vld [vmem:[#allocation7 + $0x34] sm:$0xf]
    %v154 = vld [vmem:[#allocation7 + $0x38] sm:$0xf]
    %v155 = vld [vmem:[#allocation7 + $0x3c] sm:$0xf]
    %v156 = vld [vmem:[%s4] sm:$0x1]
    %v158 = vlaneseq
    %v159 = vshrl.u32 %v158, 7
    %v160 = vsub.s32 0, %v159
    %v161 = vrot.slane %v156, %v160
    %v179 = vunpack.c.l.b16 %v140
    %v180 = vunpack.c.l.b16 %v141
    %v181 = vunpack.c.l.b16 %v142
    %v182 = vunpack.c.l.b16 %v143
    %v183 = vunpack.c.l.b16 %v144
    %v184 = vunpack.c.l.b16 %v145
    %v185 = vunpack.c.l.b16 %v146
    %v186 = vunpack.c.l.b16 %v147
    %v187 = vunpack.c.l.b16 %v148
    %v188 = vunpack.c.l.b16 %v149
    %v189 = vunpack.c.l.b16 %v150
    %v190 = vunpack.c.l.b16 %v151
    %v191 = vunpack.c.l.b16 %v152
    %v192 = vunpack.c.l.b16 %v153
    %v193 = vunpack.c.l.b16 %v154
    %v194 = vunpack.c.l.b16 %v155
    %v195 = vpack.c.b16 %v180, %v179
    %v196 = vpack.c.b16 %v182, %v181
    %v197 = vpack.c.b16 %v184, %v183
    %v198 = vpack.c.b16 %v186, %v185
    %v199 = vpack.c.b16 %v188, %v187
    %v200 = vpack.c.b16 %v190, %v189
    %v201 = vpack.c.b16 %v192, %v191
    %v202 = vpack.c.b16 %v194, %v193
    %211 = vmatprep.subr.bf16.mxu0 0
    %212 = vmatpush1.bf16.msra.mxu0 %v195
    %213 = vmatprep.subr.bf16.mxu0 0
    %214 = vmatpush1.bf16.msra.mxu0 %v196
    %215 = vmatprep.subr.bf16.mxu0 0
    %216 = vmatpush1.bf16.msra.mxu0 %v197
    %217 = vmatprep.subr.bf16.mxu0 0
    %218 = vmatpush1.bf16.msra.mxu0 %v198
    %219 = vmatprep.subr.bf16.mxu0 0
    %220 = vmatpush1.bf16.msra.mxu0 %v199
    %221 = vmatprep.subr.bf16.mxu0 0
    %222 = vmatpush1.bf16.msra.mxu0 %v200
    %223 = vmatprep.subr.bf16.mxu0 0
    %224 = vmatpush1.bf16.msra.mxu0 %v201
    %225 = vmatprep.subr.bf16.mxu0 0
    %226 = vmatpush1.bf16.msra.mxu0 %v202
    %227 = vmatprep.subr.bf16.mxu0 0
    %228 = vmatpush1.bf16.msra.mxu0 0
    %229 = vmatprep.subr.bf16.mxu0 0
    %230 = vmatpush1.bf16.msra.mxu0 0
    %231 = vmatprep.subr.bf16.mxu0 0
    %232 = vmatpush1.bf16.msra.mxu0 0
    %233 = vmatprep.subr.bf16.mxu0 0
    %234 = vmatpush1.bf16.msra.mxu0 0
    %235 = vmatprep.subr.bf16.mxu0 0
    %236 = vmatpush1.bf16.msra.mxu0 0
    %237 = vmatprep.subr.bf16.mxu0 0
    %238 = vmatpush1.bf16.msra.mxu0 0
    %239 = vmatprep.subr.bf16.mxu0 0
    %240 = vmatpush1.bf16.msra.mxu0 0
    %241 = vmatprep.subr.bf16.mxu0 0
    %242 = vmatpush1.bf16.msra.mxu0 0
    %243 = vmatprep.mubr.bf16.mxu0 0
    %244 = vmatmul.mubr.bf16.gmra.mrb[0].mxu0 %v139
    %v245 = vpop.f32.mrb[0].mxu0
    %v246 = vadd.f32 %v161, %v245
    %v247 = vpop.f32.mrb[0].mxu0
    %v248 = vpop.f32.mrb[0].mxu0
    %v249 = vpop.f32.mrb[0].mxu0
    %250 = vdwg.mxu0
    %v251 = vmax.f32 %v246, 0.0
    %252 = vst [vmem:[#allocation8] sm:$0xff] %v251
    // Predicated region
    $region34: #{tpu_custom_call.1} parent=1 // pred_check
      _
    $region35: #{tpu_custom_call.1} parent=1 // pred_check_branch
      %254 = sbr.rel (0) target = $region37
    $region36: #{tpu_custom_call.1} parent=1 // pred_region
      %s256 = ssub.s32 128, 128
      %257 = vsyncadd [#allocation4], %s256
      %s259 = sshll.u32 [#allocation8], 4
      %s260 = int_to_ptr.vmem [resolvable:$true] %s259
      %262 = dma.vmem_to_hbm [thread:$0]  %s260, 128, %s5, [#allocation4]
    $region37: #{tpu_custom_call.1} parent=1 // pred_fallthru
      _
    // Predicated region
    $region38: #{tpu_custom_call.1} parent=1 // pred_check
      _
    $region39: #{tpu_custom_call.1} parent=1 // pred_check_branch
      %264 = sbr.rel (0) target = $region41
    $region40: #{tpu_custom_call.1} parent=1 // pred_region
      %265 = dma.done [#allocation4], 128
    $region41: #{tpu_custom_call.1} parent=1 // pred_fallthru
      _
    %266 = vsyncpa [#allocation3], 1
    %267 = vsyncpa [#allocation6], 1
    %268 = vsyncpa [#allocation4], 1

</llo_original>
